<compile_context>
chip_gen: v7x
topology: tpu7x:2x2x1
jax: 0.10.0
libtpu: 0.0.40
codegen_flags: <defaults>
</compile_context>

<pallas_src>
import functools
import math

import jax
import jax.numpy as jnp
from jax.experimental import pallas as pl
from jax.experimental.pallas import tpu as pltpu

_NP = 128  # lane-dense padded output width (out_channels=6 -> 128)


def _round_up(x, m):
    return (x + m - 1) // m * m


def dn_kernel(x_ref,
              w0_ref, b0_ref,
              w1_ref, b1_ref,
              w2_ref, b2_ref,
              w3_ref, b3_ref,
              o_ref):
    # One batch tile: four Linear+ReLU layers fused on-chip.
    # MXU matmuls in bf16 with f32 accumulation; bias-add / ReLU in f32 on the
    # VPU (works on v5e/v6e/v7x alike).
    h = x_ref[...].astype(jnp.bfloat16)                              # (TM, in_c)
    h = jnp.maximum(
        jnp.dot(h, w0_ref[...], preferred_element_type=jnp.float32) + b0_ref[...], 0.0)
    h = jnp.maximum(
        jnp.dot(h.astype(jnp.bfloat16), w1_ref[...],
                preferred_element_type=jnp.float32) + b1_ref[...], 0.0)
    h = jnp.maximum(
        jnp.dot(h.astype(jnp.bfloat16), w2_ref[...],
                preferred_element_type=jnp.float32) + b2_ref[...], 0.0)
    h = jnp.maximum(
        jnp.dot(h.astype(jnp.bfloat16), w3_ref[...],
                preferred_element_type=jnp.float32) + b3_ref[...], 0.0)
    o_ref[...] = h.astype(o_ref.dtype)                               # (TM, 128) bf16


def prepare_dn_params(params):
    """One-time weight/bias prep (hoisted out of the per-call forward path):
    cast matmul operands to bf16 and zero-pad fc3 / b3 to 128 output lanes."""
    (w0, b0), (w1, b1), (w2, b2), (w3, b3) = params
    out_c = w3.shape[1]
    w3p = jnp.zeros((w3.shape[0], _NP), jnp.bfloat16).at[:, :out_c].set(
        w3.astype(jnp.bfloat16))
    b3p = jnp.zeros((1, _NP), jnp.float32).at[:, :out_c].set(b3.astype(jnp.float32))
    return (w0.astype(jnp.bfloat16), b0.astype(jnp.float32),
            w1.astype(jnp.bfloat16), b1.astype(jnp.float32),
            w2.astype(jnp.bfloat16), b2.astype(jnp.float32),
            w3p, b3p)


def _pick_tm(b16):
    if b16 <= 512:
        return b16                               # single tile for small batches
    # >=2 tiles so v7x's two TensorCores both get work; <=~2048 rows/tile so
    # per-step compute dwarfs the ~0.35us grid-step overhead while the working
    # set (incl. double buffers + f32 intermediates) stays <~10 MiB of VMEM.
    n_tiles = max(2, pl.cdiv(b16, 2048))
    return _round_up(pl.cdiv(b16, n_tiles), 16)


@functools.partial(jax.jit, static_argnames=("out_channels", "tm"))
def dn_forward(x, flat_params, *, out_channels=6, tm=None):
    """x: (B, in_channels) float32; flat_params: output of prepare_dn_params."""
    B, in_c = x.shape
    b16 = _round_up(max(B, 16), 16)
    if tm is None:
        tm = _pick_tm(b16)
    else:
        tm = max(16, _round_up(min(tm, b16), 16))
    B_pad = _round_up(B, tm)                      # waste < tm rows (was up to ~2x B)

    xp = x.astype(jnp.float32)
    if B_pad != B:                                # cheap row-pad only when ragged
        xp = jnp.zeros((B_pad, in_c), jnp.float32).at[:B].set(xp)

    grid = (B_pad // tm,)

    in_specs = [pl.BlockSpec((tm, in_c), lambda i: (i, 0))]
    # Weights/biases: same block every grid step -> DMA'd from HBM once, VMEM-resident.
    in_specs += [pl.BlockSpec(a.shape, lambda i: (0, 0)) for a in flat_params]
    out_specs = pl.BlockSpec((tm, _NP), lambda i: (i, 0))

    flops = 2 * B_pad * (in_c * 512 + 512 * 256 + 256 * 128 + 128 * _NP)
    bytes_accessed = int(B_pad * in_c * 4 + B_pad * _NP * 2
                         + sum(int(a.size) * a.dtype.itemsize for a in flat_params))
    cost = pl.CostEstimate(flops=flops, transcendentals=0,
                           bytes_accessed=bytes_accessed)

    out = pl.pallas_call(
        dn_kernel,
        out_shape=jax.ShapeDtypeStruct((B_pad, _NP), jnp.bfloat16),
        grid=grid,
        in_specs=in_specs,
        out_specs=out_specs,
        compiler_params=pltpu.CompilerParams(
            dimension_semantics=("parallel",),    # megacore / dual-TC batch sharding
            vmem_limit_bytes=32 * 1024 * 1024),
        cost_estimate=cost,
    )(xp, *flat_params)

    # Module contract is (B, out_channels) f32; consumers that accept the padded
    # bf16 buffer could take `out` directly and skip this slice.
    return out[:B, :out_channels].astype(jnp.float32)


def xavier_uniform(key, fan_in, fan_out):
    # matches nn.init.xavier_uniform_ bound; stored as (fan_in, fan_out) = W.T
    bound = math.sqrt(6.0 / (fan_in + fan_out))
    return jax.random.uniform(key, (fan_in, fan_out), jnp.float32, -bound, bound)


def linear_bias(key, fan_in, fan_out):
    # PyTorch default Linear bias init: U(-1/sqrt(fan_in), 1/sqrt(fan_in))
    bound = 1.0 / math.sqrt(fan_in)
    return jax.random.uniform(key, (1, fan_out), jnp.float32, -bound, bound)


def init_dn_params(key, in_channels, out_channels=6):
    dims = [in_channels, 512, 256, 128, out_channels]
    params = []
    for i in range(4):
        key, kw, kb = jax.random.split(key, 3)
        w = xavier_uniform(kw, dims[i], dims[i + 1])
        b = linear_bias(kb, dims[i], dims[i + 1])
        params.append((w, b))
    return params


def dn_reference(x, params):
    h = x
    for w, b in params:
        h = jnp.maximum(h @ w + b, 0.0)
    return h


if __name__ == "__main__":
    key = jax.random.PRNGKey(0)
    k_x, k_p, k_x2 = jax.random.split(key, 3)

    batch, in_channels, out_channels = 8, 32, 6
    x = jax.random.normal(k_x, (batch, in_channels), jnp.float32)
    params = init_dn_params(k_p, in_channels, out_channels)
    flat = prepare_dn_params(params)     # one-time weight prep (hoisted out of forward)

    out = jax.block_until_ready(dn_forward(x, flat, out_channels=out_channels))
    ref = dn_reference(x, params)
    assert out.shape == (batch, out_channels)
    # bf16 MXU matmuls (f32 accumulation) + bf16 output store -> relaxed tolerance.
    assert jnp.allclose(out, ref, atol=3e-2, rtol=3e-2)

    # Multi-step grid + ragged batch: 40 rows pad to 48 = 3 tiles of 16.
    x2 = jax.random.normal(k_x2, (40, in_channels), jnp.float32)
    out2 = jax.block_until_ready(dn_forward(x2, flat, out_channels=out_channels, tm=16))
    ref2 = dn_reference(x2, params)
    assert out2.shape == (40, out_channels)
    assert jnp.allclose(out2, ref2, atol=3e-2, rtol=3e-2)

    print("KERNEL_OK")
</pallas_src>

<mosaic_0001>
module attributes {stable_mosaic.version = 11 : i64} {
  func.func @dn_kernel(%arg0: i32, %arg1: memref<16x32xf32, #tpu.memory_space<vmem>>, %arg2: memref<32x512xbf16, #tpu.memory_space<vmem>>, %arg3: memref<1x512xf32, #tpu.memory_space<vmem>>, %arg4: memref<512x256xbf16, #tpu.memory_space<vmem>>, %arg5: memref<1x256xf32, #tpu.memory_space<vmem>>, %arg6: memref<256x128xbf16, #tpu.memory_space<vmem>>, %arg7: memref<1x128xf32, #tpu.memory_space<vmem>>, %arg8: memref<128x128xbf16, #tpu.memory_space<vmem>>, %arg9: memref<1x128xf32, #tpu.memory_space<vmem>>, %arg10: memref<16x128xbf16, #tpu.memory_space<vmem>>) attributes {dimension_semantics = [#tpu.dimension_semantics<parallel>], iteration_bounds = array<i64: 1>, scalar_prefetch = 0 : i64, scratch_operands = 0 : i64, tpu.core_type = #tpu.core_type<tc>, window_params = [{transform_indices = @transform_0, window_bounds = array<i64: 16, 32>}, {pipeline_mode = #tpu.pipeline_mode<synchronous>, transform_indices = @transform_1, window_bounds = array<i64: 32, 512>}, {pipeline_mode = #tpu.pipeline_mode<synchronous>, transform_indices = @transform_2, window_bounds = array<i64: 1, 512>}, {pipeline_mode = #tpu.pipeline_mode<synchronous>, transform_indices = @transform_3, window_bounds = array<i64: 512, 256>}, {pipeline_mode = #tpu.pipeline_mode<synchronous>, transform_indices = @transform_4, window_bounds = array<i64: 1, 256>}, {pipeline_mode = #tpu.pipeline_mode<synchronous>, transform_indices = @transform_5, window_bounds = array<i64: 256, 128>}, {pipeline_mode = #tpu.pipeline_mode<synchronous>, transform_indices = @transform_6, window_bounds = array<i64: 1, 128>}, {pipeline_mode = #tpu.pipeline_mode<synchronous>, transform_indices = @transform_7, window_bounds = array<i64: 128, 128>}, {pipeline_mode = #tpu.pipeline_mode<synchronous>, transform_indices = @transform_8, window_bounds = array<i64: 1, 128>}, {transform_indices = @transform_9, window_bounds = array<i64: 16, 128>}]} {
    %c0 = arith.constant 0 : index
    %c0_0 = arith.constant 0 : index
    %0 = vector.load %arg1[%c0, %c0_0] : memref<16x32xf32, #tpu.memory_space<vmem>>, vector<16x32xf32>
    %1 = arith.truncf %0 : vector<16x32xf32> to vector<16x32xbf16>
    %c0_1 = arith.constant 0 : index
    %c0_2 = arith.constant 0 : index
    %2 = vector.load %arg2[%c0_1, %c0_2] : memref<32x512xbf16, #tpu.memory_space<vmem>>, vector<32x512xbf16>
    %cst = arith.constant dense<0.000000e+00> : vector<16x512xf32>
    %3 = tpu.matmul %1, %2, %cst {dimension_numbers = #tpu.dot_dimension_numbers<[1], [0], [0], [1], [0, 0, 1, 1], [], []>} : vector<16x32xbf16>, vector<32x512xbf16>, vector<16x512xf32> -> vector<16x512xf32>
    %c0_3 = arith.constant 0 : index
    %c0_4 = arith.constant 0 : index
    %4 = vector.load %arg3[%c0_3, %c0_4] : memref<1x512xf32, #tpu.memory_space<vmem>>, vector<1x512xf32>
    %5 = vector.broadcast %4 : vector<1x512xf32> to vector<16x512xf32>
    %6 = arith.addf %3, %5 : vector<16x512xf32>
    %cst_5 = arith.constant 0.000000e+00 : f32
    %7 = vector.broadcast %cst_5 : f32 to vector<16x512xf32>
    %8 = arith.maximumf %6, %7 : vector<16x512xf32>
    %9 = arith.truncf %8 : vector<16x512xf32> to vector<16x512xbf16>
    %c0_6 = arith.constant 0 : index
    %c0_7 = arith.constant 0 : index
    %10 = vector.load %arg4[%c0_6, %c0_7] : memref<512x256xbf16, #tpu.memory_space<vmem>>, vector<512x256xbf16>
    %cst_8 = arith.constant dense<0.000000e+00> : vector<16x256xf32>
    %11 = tpu.matmul %9, %10, %cst_8 {dimension_numbers = #tpu.dot_dimension_numbers<[1], [0], [0], [1], [0, 0, 1, 1], [], []>} : vector<16x512xbf16>, vector<512x256xbf16>, vector<16x256xf32> -> vector<16x256xf32>
    %c0_9 = arith.constant 0 : index
    %c0_10 = arith.constant 0 : index
    %12 = vector.load %arg5[%c0_9, %c0_10] : memref<1x256xf32, #tpu.memory_space<vmem>>, vector<1x256xf32>
    %13 = vector.broadcast %12 : vector<1x256xf32> to vector<16x256xf32>
    %14 = arith.addf %11, %13 : vector<16x256xf32>
    %cst_11 = arith.constant 0.000000e+00 : f32
    %15 = vector.broadcast %cst_11 : f32 to vector<16x256xf32>
    %16 = arith.maximumf %14, %15 : vector<16x256xf32>
    %17 = arith.truncf %16 : vector<16x256xf32> to vector<16x256xbf16>
    %c0_12 = arith.constant 0 : index
    %c0_13 = arith.constant 0 : index
    %18 = vector.load %arg6[%c0_12, %c0_13] : memref<256x128xbf16, #tpu.memory_space<vmem>>, vector<256x128xbf16>
    %cst_14 = arith.constant dense<0.000000e+00> : vector<16x128xf32>
    %19 = tpu.matmul %17, %18, %cst_14 {dimension_numbers = #tpu.dot_dimension_numbers<[1], [0], [0], [1], [0, 0, 1, 1], [], []>} : vector<16x256xbf16>, vector<256x128xbf16>, vector<16x128xf32> -> vector<16x128xf32>
    %c0_15 = arith.constant 0 : index
    %c0_16 = arith.constant 0 : index
    %20 = vector.load %arg7[%c0_15, %c0_16] : memref<1x128xf32, #tpu.memory_space<vmem>>, vector<1x128xf32>
    %21 = vector.broadcast %20 : vector<1x128xf32> to vector<16x128xf32>
    %22 = arith.addf %19, %21 : vector<16x128xf32>
    %cst_17 = arith.constant 0.000000e+00 : f32
    %23 = vector.broadcast %cst_17 : f32 to vector<16x128xf32>
    %24 = arith.maximumf %22, %23 : vector<16x128xf32>
    %25 = arith.truncf %24 : vector<16x128xf32> to vector<16x128xbf16>
    %c0_18 = arith.constant 0 : index
    %c0_19 = arith.constant 0 : index
    %26 = vector.load %arg8[%c0_18, %c0_19] : memref<128x128xbf16, #tpu.memory_space<vmem>>, vector<128x128xbf16>
    %cst_20 = arith.constant dense<0.000000e+00> : vector<16x128xf32>
    %27 = tpu.matmul %25, %26, %cst_20 {dimension_numbers = #tpu.dot_dimension_numbers<[1], [0], [0], [1], [0, 0, 1, 1], [], []>} : vector<16x128xbf16>, vector<128x128xbf16>, vector<16x128xf32> -> vector<16x128xf32>
    %c0_21 = arith.constant 0 : index
    %c0_22 = arith.constant 0 : index
    %28 = vector.load %arg9[%c0_21, %c0_22] : memref<1x128xf32, #tpu.memory_space<vmem>>, vector<1x128xf32>
    %29 = vector.broadcast %28 : vector<1x128xf32> to vector<16x128xf32>
    %30 = arith.addf %27, %29 : vector<16x128xf32>
    %cst_23 = arith.constant 0.000000e+00 : f32
    %31 = vector.broadcast %cst_23 : f32 to vector<16x128xf32>
    %32 = arith.maximumf %30, %31 : vector<16x128xf32>
    %33 = arith.truncf %32 : vector<16x128xf32> to vector<16x128xbf16>
    %c0_24 = arith.constant 0 : index
    %c0_25 = arith.constant 0 : index
    %34 = vector.load %arg10[%c0_24, %c0_25] : memref<16x128xbf16, #tpu.memory_space<vmem>>, vector<16x128xbf16>
    tpu.vector_store %arg10[%c0_24, %c0_25], %33 {strides = array<i32>} : memref<16x128xbf16, #tpu.memory_space<vmem>>, vector<16x128xbf16>,
    return
  }
  func.func @transform_0(%arg0: i32) -> (i32, i32) {
    %c0_i32 = arith.constant 0 : i32
    %c0_i32_0 = arith.constant 0 : i32
    return %arg0, %c0_i32 : i32, i32
  }
  func.func @transform_1(%arg0: i32) -> (i32, i32) {
    %c0_i32 = arith.constant 0 : i32
    %c0_i32_0 = arith.constant 0 : i32
    %c0_i32_1 = arith.constant 0 : i32
    return %c0_i32, %c0_i32_0 : i32, i32
  }
  func.func @transform_2(%arg0: i32) -> (i32, i32) {
    %c0_i32 = arith.constant 0 : i32
    %c0_i32_0 = arith.constant 0 : i32
    %c0_i32_1 = arith.constant 0 : i32
    return %c0_i32, %c0_i32_0 : i32, i32
  }
  func.func @transform_3(%arg0: i32) -> (i32, i32) {
    %c0_i32 = arith.constant 0 : i32
    %c0_i32_0 = arith.constant 0 : i32
    %c0_i32_1 = arith.constant 0 : i32
    return %c0_i32, %c0_i32_0 : i32, i32
  }
  func.func @transform_4(%arg0: i32) -> (i32, i32) {
    %c0_i32 = arith.constant 0 : i32
    %c0_i32_0 = arith.constant 0 : i32
    %c0_i32_1 = arith.constant 0 : i32
    return %c0_i32, %c0_i32_0 : i32, i32
  }
  func.func @transform_5(%arg0: i32) -> (i32, i32) {
    %c0_i32 = arith.constant 0 : i32
    %c0_i32_0 = arith.constant 0 : i32
    %c0_i32_1 = arith.constant 0 : i32
    return %c0_i32, %c0_i32_0 : i32, i32
  }
  func.func @transform_6(%arg0: i32) -> (i32, i32) {
    %c0_i32 = arith.constant 0 : i32
    %c0_i32_0 = arith.constant 0 : i32
    %c0_i32_1 = arith.constant 0 : i32
    return %c0_i32, %c0_i32_0 : i32, i32
  }
  func.func @transform_7(%arg0: i32) -> (i32, i32) {
    %c0_i32 = arith.constant 0 : i32
    %c0_i32_0 = arith.constant 0 : i32
    %c0_i32_1 = arith.constant 0 : i32
    return %c0_i32, %c0_i32_0 : i32, i32
  }
  func.func @transform_8(%arg0: i32) -> (i32, i32) {
    %c0_i32 = arith.constant 0 : i32
    %c0_i32_0 = arith.constant 0 : i32
    %c0_i32_1 = arith.constant 0 : i32
    return %c0_i32, %c0_i32_0 : i32, i32
  }
  func.func @transform_9(%arg0: i32) -> (i32, i32) {
    %c0_i32 = arith.constant 0 : i32
    %c0_i32_0 = arith.constant 0 : i32
    return %arg0, %c0_i32 : i32, i32
  }
}

</mosaic_0001>

<llo_original>
// kernel: dn_forward.1
$region0: #{dn_forward.1}
  #allocation0 [shape = 'u32[]', space=smem, size = 0x4, offset = 0x4, fixed_abs, tag = 'smem constant byte address 0x4 - core index']
  #allocation1 [shape = 'u32[144,128]{1,0:T(1,128)}', space=vmem, size = 0x12000, scoped, tag = 'internal scratch']
  %s0 = inlined_call_operand.vmem [shape: f32[16,32], index: 0, kind: input, shape index: {}]
  %s1 = inlined_call_operand.hbm [shape: bf16[32,512], index: 1, kind: input, shape index: {}]
  %s2 = inlined_call_operand.vmem [shape: f32[1,512], index: 2, kind: input, shape index: {}]
  %s3 = inlined_call_operand.hbm [shape: bf16[512,256], index: 3, kind: input, shape index: {}]
  %s4 = inlined_call_operand.vmem [shape: f32[1,256], index: 4, kind: input, shape index: {}]
  %s5 = inlined_call_operand.hbm [shape: bf16[256,128], index: 5, kind: input, shape index: {}]
  %s6 = inlined_call_operand.vmem [shape: f32[1,128], index: 6, kind: input, shape index: {}]
  %s7 = inlined_call_operand.hbm [shape: bf16[128,128], index: 7, kind: input, shape index: {}]
  %s8 = inlined_call_operand.vmem [shape: f32[1,128], index: 8, kind: input, shape index: {}]
  %s9 = inlined_call_operand.vmem [shape: bf16[16,128], index: 9, kind: output, shape index: {}]
  %s10 = sld [smem:[#allocation0]]
  $region62: #{dn_forward.1} parent=0
    _
  %s12 = ssub.s32 1, %s10
  %s13 = scalar_select 0, %s12, %s10
  $region1: #{dn_forward.1} parent=0
    #allocation2 [shape = 'u8[32768]{0}', space=vmem, size = 0x8000, scoped, tag = 'input window, operand 1, single buffered']
    #allocation3 [shape = 's32[1]{0}', space=sflag, size = 0x4, scoped, tag = 'scoped memory for dn_forward.1']
    #allocation4 [shape = 'u8[262144]{0}', space=vmem, size = 0x40000, scoped, tag = 'input window, operand 3, single buffered']
    #allocation5 [shape = 's32[1]{0}', space=sflag, size = 0x4, scoped, tag = 'scoped memory for dn_forward.1']
    #allocation6 [shape = 'u8[65536]{0}', space=vmem, size = 0x10000, scoped, tag = 'input window, operand 5, single buffered']
    #allocation7 [shape = 'u8[32768]{0}', space=vmem, size = 0x8000, scoped, tag = 'input window, operand 7, single buffered']
    #allocation8 [shape = 's32[1]{0}', space=sflag, size = 0x4, scoped, tag = 'scoped memory for dn_forward.1']
    %14 = vsyncpa [#allocation3], 0
    %15 = vsyncpa [#allocation5], 0
    %16 = vsyncpa [#allocation8], 0
    // Predicated region
    $region2: #{dn_forward.1} parent=1 // pred_check
      _
    $region3: #{dn_forward.1} parent=1 // pred_check_branch
      %18 = sbr.rel (0) target = $region5
    $region4: #{dn_forward.1} parent=1 // pred_region
      _
    $region5: #{dn_forward.1} parent=1 // pred_fallthru
      _
    // Predicated region
    $region6: #{dn_forward.1} parent=1 // pred_check
      _
    $region7: #{dn_forward.1} parent=1 // pred_check_branch
      %20 = sbr.rel (0) target = $region9
    $region8: #{dn_forward.1} parent=1 // pred_region
      %s22 = ssub.s32 1024, 1024
      %23 = vsyncadd [#allocation3], %s22
      %s24 = sshll.u32 [#allocation2], 4
      %s25 = int_to_ptr.vmem [resolvable:$true] %s24
      %30 = dma.hbm_to_vmem [thread:$0]  %s1, 1024, %s25, [#allocation3], 256, 256, 16
    $region9: #{dn_forward.1} parent=1 // pred_fallthru
      _
    // Predicated region
    $region10: #{dn_forward.1} parent=1 // pred_check
      _
    $region11: #{dn_forward.1} parent=1 // pred_check_branch
      %32 = sbr.rel (0) target = $region13
    $region12: #{dn_forward.1} parent=1 // pred_region
      _
    $region13: #{dn_forward.1} parent=1 // pred_fallthru
      _
    // Predicated region
    $region14: #{dn_forward.1} parent=1 // pred_check
      _
    $region15: #{dn_forward.1} parent=1 // pred_check_branch
      %34 = sbr.rel (0) target = $region17
    $region16: #{dn_forward.1} parent=1 // pred_region
      %s36 = ssub.s32 8192, 8192
      %37 = vsyncadd [#allocation5], %s36
      %s38 = sshll.u32 [#allocation4], 4
      %s39 = int_to_ptr.vmem [resolvable:$true] %s38
      %44 = dma.hbm_to_vmem [thread:$0]  %s3, 8192, %s39, [#allocation5], 128, 128, 8
    $region17: #{dn_forward.1} parent=1 // pred_fallthru
      _
    // Predicated region
    $region18: #{dn_forward.1} parent=1 // pred_check
      _
    $region19: #{dn_forward.1} parent=1 // pred_check_branch
      %46 = sbr.rel (0) target = $region21
    $region20: #{dn_forward.1} parent=1 // pred_region
      _
    $region21: #{dn_forward.1} parent=1 // pred_fallthru
      _
    // Predicated region
    $region22: #{dn_forward.1} parent=1 // pred_check
      _
    $region23: #{dn_forward.1} parent=1 // pred_check_branch
      %48 = sbr.rel (0) target = $region25
    $region24: #{dn_forward.1} parent=1 // pred_region
      %s50 = ssub.s32 2048, 2048
      %51 = vsyncadd [#allocation5], %s50
      %s52 = sshll.u32 [#allocation6], 4
      %s53 = int_to_ptr.vmem [resolvable:$true] %s52
      %58 = dma.hbm_to_vmem [thread:$0]  %s5, 2048, %s53, [#allocation5], 64, 64, 4
    $region25: #{dn_forward.1} parent=1 // pred_fallthru
      _
    // Predicated region
    $region26: #{dn_forward.1} parent=1 // pred_check
      _
    $region27: #{dn_forward.1} parent=1 // pred_check_branch
      %60 = sbr.rel (0) target = $region29
    $region28: #{dn_forward.1} parent=1 // pred_region
      _
    $region29: #{dn_forward.1} parent=1 // pred_fallthru
      _
    // Predicated region
    $region30: #{dn_forward.1} parent=1 // pred_check
      _
    $region31: #{dn_forward.1} parent=1 // pred_check_branch
      %62 = sbr.rel (0) target = $region33
    $region32: #{dn_forward.1} parent=1 // pred_region
      %s64 = ssub.s32 1024, 1024
      %65 = vsyncadd [#allocation8], %s64
      %s66 = sshll.u32 [#allocation7], 4
      %s67 = int_to_ptr.vmem [resolvable:$true] %s66
      %72 = dma.hbm_to_vmem [thread:$0]  %s7, 1024, %s67, [#allocation8], 64, 64, 4
    $region33: #{dn_forward.1} parent=1 // pred_fallthru
      _
    // Predicated region
    $region34: #{dn_forward.1} parent=1 // pred_check
      _
    $region35: #{dn_forward.1} parent=1 // pred_check_branch
      %74 = sbr.rel (0) target = $region37
    $region36: #{dn_forward.1} parent=1 // pred_region
      _
    $region37: #{dn_forward.1} parent=1 // pred_fallthru
      _
    // Predicated region
    $region38: #{dn_forward.1} parent=1 // pred_check
      _
    $region39: #{dn_forward.1} parent=1 // pred_check_branch
      %76 = sbr.rel (0) target = $region41
    $region40: #{dn_forward.1} parent=1 // pred_region
      %77 = dma.done [#allocation3], 1024
    $region41: #{dn_forward.1} parent=1 // pred_fallthru
      _
    // Predicated region
    $region42: #{dn_forward.1} parent=1 // pred_check
      _
    $region43: #{dn_forward.1} parent=1 // pred_check_branch
      %79 = sbr.rel (0) target = $region45
    $region44: #{dn_forward.1} parent=1 // pred_region
      %80 = dma.done [#allocation5], 8192
    $region45: #{dn_forward.1} parent=1 // pred_fallthru
      _
    // Predicated region
    $region46: #{dn_forward.1} parent=1 // pred_check
      _
    $region47: #{dn_forward.1} parent=1 // pred_check_branch
      %82 = sbr.rel (0) target = $region49
    $region48: #{dn_forward.1} parent=1 // pred_region
      %83 = dma.done [#allocation5], 2048
    $region49: #{dn_forward.1} parent=1 // pred_fallthru
      _
    // Predicated region
    $region50: #{dn_forward.1} parent=1 // pred_check
      _
    $region51: #{dn_forward.1} parent=1 // pred_check_branch
      %85 = sbr.rel (0) target = $region53
    $region52: #{dn_forward.1} parent=1 // pred_region
      %86 = dma.done [#allocation8], 1024
    $region53: #{dn_forward.1} parent=1 // pred_fallthru
      _
    %v88 = vld [vmem:[%s0] sm:$0xff]
    %v89 = vld [vmem:[%s0 + $0x8] sm:$0xff]
    %v90 = vpack.c.bf16 %v89, %v88
    %v91 = vld [vmem:[#allocation2] sm:$0xff]
    %v92 = vld [vmem:[#allocation2 + $0x8] sm:$0xff]
    %v93 = vld [vmem:[#allocation2 + $0x10] sm:$0xff]
    %v94 = vld [vmem:[#allocation2 + $0x18] sm:$0xff]
    %v95 = vld [vmem:[#allocation2 + $0x20] sm:$0xff]
    %v96 = vld [vmem:[#allocation2 + $0x28] sm:$0xff]
    %v97 = vld [vmem:[#allocation2 + $0x30] sm:$0xff]
    %v98 = vld [vmem:[#allocation2 + $0x38] sm:$0xff]
    %v99 = vld [vmem:[%s2] sm:$0xf]
    %v101 = vlaneseq
    %v102 = vshrl.u32 %v101, 7
    %v103 = vsub.s32 0, %v102
    %v104 = vrot.slane %v99, %v103
    %v105 = vlaneseq
    %v106 = vshrl.u32 %v105, 7
    %v107 = vsub.s32 1, %v106
    %v108 = vrot.slane %v99, %v107
    %v109 = vlaneseq
    %v110 = vshrl.u32 %v109, 7
    %v111 = vsub.s32 2, %v110
    %v112 = vrot.slane %v99, %v111
    %v113 = vlaneseq
    %v114 = vshrl.u32 %v113, 7
    %v115 = vsub.s32 3, %v114
    %v116 = vrot.slane %v99, %v115
    %v129 = vunpack.c.l.b16 %v91
    %v130 = vunpack.c.h.b16 %v91
    %v131 = vunpack.c.l.b16 %v92
    %v132 = vunpack.c.h.b16 %v92
    %v133 = vunpack.c.l.b16 %v93
    %v134 = vunpack.c.h.b16 %v93
    %v135 = vunpack.c.l.b16 %v94
    %v136 = vunpack.c.h.b16 %v94
    %v137 = vunpack.c.l.b16 %v95
    %v138 = vunpack.c.h.b16 %v95
    %v139 = vunpack.c.l.b16 %v96
    %v140 = vunpack.c.h.b16 %v96
    %v141 = vunpack.c.l.b16 %v97
    %v142 = vunpack.c.h.b16 %v97
    %v143 = vunpack.c.l.b16 %v98
    %v144 = vunpack.c.h.b16 %v98
    %v145 = vpack.c.b16 %v133, %v129
    %v146 = vpack.c.b16 %v134, %v130
    %v147 = vpack.c.b16 %v135, %v131
    %v148 = vpack.c.b16 %v136, %v132
    %v149 = vpack.c.b16 %v141, %v137
    %v150 = vpack.c.b16 %v142, %v138
    %v151 = vpack.c.b16 %v143, %v139
    %v152 = vpack.c.b16 %v144, %v140
    %vm161 = vcmask 261120
    %v163 = vsel %vm161, %v90, 0
    %165 = vmatprep.subr.bf16.mxu0 %v146
    %166 = vmatpush1.bf16.msra.mxu0 %v145
    %167 = vmatprep.subr.bf16.mxu0 %v150
    %168 = vmatpush1.bf16.msra.mxu0 %v149
    %169 = vmatprep.subr.bf16.mxu0 0
    %170 = vmatpush1.bf16.msra.mxu0 0
    %171 = vmatprep.subr.bf16.mxu0 0
    %172 = vmatpush1.bf16.msra.mxu0 0
    %173 = vmatprep.subr.bf16.mxu0 0
    %174 = vmatpush1.bf16.msra.mxu0 0
    %175 = vmatprep.subr.bf16.mxu0 0
    %176 = vmatpush1.bf16.msra.mxu0 0
    %177 = vmatprep.subr.bf16.mxu0 0
    %178 = vmatpush1.bf16.msra.mxu0 0
    %179 = vmatprep.subr.bf16.mxu0 0
    %180 = vmatpush1.bf16.msra.mxu0 0
    %181 = vmatprep.subr.bf16.mxu0 0
    %182 = vmatpush1.bf16.msra.mxu0 0
    %183 = vmatprep.subr.bf16.mxu0 0
    %184 = vmatpush1.bf16.msra.mxu0 0
    %185 = vmatprep.subr.bf16.mxu0 0
    %186 = vmatpush1.bf16.msra.mxu0 0
    %187 = vmatprep.subr.bf16.mxu0 0
    %188 = vmatpush1.bf16.msra.mxu0 0
    %189 = vmatprep.subr.bf16.mxu0 0
    %190 = vmatpush1.bf16.msra.mxu0 0
    %191 = vmatprep.subr.bf16.mxu0 0
    %192 = vmatpush1.bf16.msra.mxu0 0
    %193 = vmatprep.subr.bf16.mxu0 0
    %194 = vmatpush1.bf16.msra.mxu0 0
    %195 = vmatprep.subr.bf16.mxu0 0
    %196 = vmatpush1.bf16.msra.mxu0 0
    %197 = vmatprep.mubr.bf16.mxu0 0
    %198 = vmatmul.mubr.bf16.gmra.mrb[0].mxu0 %v163
    %v199 = vpop.f32.mrb[0].mxu0
    %v200 = vadd.f32 %v104, %v199
    %v201 = vpop.f32.mrb[0].mxu0
    %v202 = vadd.f32 %v108, %v201
    %v203 = vpop.f32.mrb[0].mxu0
    %v204 = vadd.f32 %v104, %v203
    %v205 = vpop.f32.mrb[0].mxu0
    %v206 = vadd.f32 %v108, %v205
    %207 = vdwg.mxu0
    %208 = vmatprep.subr.bf16.mxu0 %v148
    %209 = vmatpush1.bf16.msra.mxu0 %v147
    %210 = vmatprep.subr.bf16.mxu0 %v152
    %211 = vmatpush1.bf16.msra.mxu0 %v151
    %212 = vmatprep.subr.bf16.mxu0 0
    %213 = vmatpush1.bf16.msra.mxu0 0
    %214 = vmatprep.subr.bf16.mxu0 0
    %215 = vmatpush1.bf16.msra.mxu0 0
    %216 = vmatprep.subr.bf16.mxu0 0
    %217 = vmatpush1.bf16.msra.mxu0 0
    %218 = vmatprep.subr.bf16.mxu0 0
    %219 = vmatpush1.bf16.msra.mxu0 0
    %220 = vmatprep.subr.bf16.mxu0 0
    %221 = vmatpush1.bf16.msra.mxu0 0
    %222 = vmatprep.subr.bf16.mxu0 0
    %223 = vmatpush1.bf16.msra.mxu0 0
    %224 = vmatprep.subr.bf16.mxu0 0
    %225 = vmatpush1.bf16.msra.mxu0 0
    %226 = vmatprep.subr.bf16.mxu0 0
    %227 = vmatpush1.bf16.msra.mxu0 0
    %228 = vmatprep.subr.bf16.mxu0 0
    %229 = vmatpush1.bf16.msra.mxu0 0
    %230 = vmatprep.subr.bf16.mxu0 0
    %231 = vmatpush1.bf16.msra.mxu0 0
    %232 = vmatprep.subr.bf16.mxu0 0
    %233 = vmatpush1.bf16.msra.mxu0 0
    %234 = vmatprep.subr.bf16.mxu0 0
    %235 = vmatpush1.bf16.msra.mxu0 0
    %236 = vmatprep.subr.bf16.mxu0 0
    %237 = vmatpush1.bf16.msra.mxu0 0
    %238 = vmatprep.subr.bf16.mxu0 0
    %239 = vmatpush1.bf16.msra.mxu0 0
    %240 = vmatprep.mubr.bf16.mxu0 0
    %241 = vmatmul.mubr.bf16.gmra.mrb[0].mxu0 %v163
    %v242 = vpop.f32.mrb[0].mxu0
    %v243 = vadd.f32 %v112, %v242
    %v244 = vpop.f32.mrb[0].mxu0
    %v245 = vadd.f32 %v116, %v244
    %v246 = vpop.f32.mrb[0].mxu0
    %v247 = vadd.f32 %v112, %v246
    %v248 = vpop.f32.mrb[0].mxu0
    %v249 = vadd.f32 %v116, %v248
    %250 = vdwg.mxu0
    %v251 = vmax.f32 %v200, 0.0
    %v252 = vmax.f32 %v202, 0.0
    %v253 = vmax.f32 %v243, 0.0
    %v254 = vmax.f32 %v245, 0.0
    %v255 = vmax.f32 %v204, 0.0
    %v256 = vmax.f32 %v206, 0.0
    %v257 = vmax.f32 %v247, 0.0
    %v258 = vmax.f32 %v249, 0.0
    %v259 = vpack.c.bf16 %v255, %v251
    %v260 = vpack.c.bf16 %v256, %v252
    %v261 = vpack.c.bf16 %v257, %v253
    %v262 = vpack.c.bf16 %v258, %v254
    %v263 = vld [vmem:[#allocation4] sm:$0xff]
    %v264 = vld [vmem:[#allocation4 + $0x8] sm:$0xff]
    %v265 = vld [vmem:[#allocation4 + $0x10] sm:$0xff]
    %v266 = vld [vmem:[#allocation4 + $0x18] sm:$0xff]
    %v267 = vld [vmem:[#allocation4 + $0x20] sm:$0xff]
    %v268 = vld [vmem:[#allocation4 + $0x28] sm:$0xff]
    %v269 = vld [vmem:[#allocation4 + $0x30] sm:$0xff]
    %v270 = vld [vmem:[#allocation4 + $0x38] sm:$0xff]
    %v271 = vld [vmem:[#allocation4 + $0x40] sm:$0xff]
    %v272 = vld [vmem:[#allocation4 + $0x48] sm:$0xff]
    %v273 = vld [vmem:[#allocation4 + $0x50] sm:$0xff]
    %v274 = vld [vmem:[#allocation4 + $0x58] sm:$0xff]
    %v275 = vld [vmem:[#allocation4 + $0x60] sm:$0xff]
    %v276 = vld [vmem:[#allocation4 + $0x68] sm:$0xff]
    %v277 = vld [vmem:[#allocation4 + $0x70] sm:$0xff]
    %v278 = vld [vmem:[#allocation4 + $0x78] sm:$0xff]
    %v279 = vld [vmem:[#allocation4 + $0x80] sm:$0xff]
    %v280 = vld [vmem:[#allocation4 + $0x88] sm:$0xff]
    %v281 = vld [vmem:[#allocation4 + $0x90] sm:$0xff]
    %v282 = vld [vmem:[#allocation4 + $0x98] sm:$0xff]
    %v283 = vld [vmem:[#allocation4 + $0xa0] sm:$0xff]
    %v284 = vld [vmem:[#allocation4 + $0xa8] sm:$0xff]
    %v285 = vld [vmem:[#allocation4 + $0xb0] sm:$0xff]
    %v286 = vld [vmem:[#allocation4 + $0xb8] sm:$0xff]
    %v287 = vld [vmem:[#allocation4 + $0xc0] sm:$0xff]
    %v288 = vld [vmem:[#allocation4 + $0xc8] sm:$0xff]
    %v289 = vld [vmem:[#allocation4 + $0xd0] sm:$0xff]
    %v290 = vld [vmem:[#allocation4 + $0xd8] sm:$0xff]
    %v291 = vld [vmem:[#allocation4 + $0xe0] sm:$0xff]
    %v292 = vld [vmem:[#allocation4 + $0xe8] sm:$0xff]
    %v293 = vld [vmem:[#allocation4 + $0xf0] sm:$0xff]
    %v294 = vld [vmem:[#allocation4 + $0xf8] sm:$0xff]
    %v295 = vld [vmem:[#allocation4 + $0x100] sm:$0xff]
    %v296 = vld [vmem:[#allocation4 + $0x108] sm:$0xff]
    %v297 = vld [vmem:[#allocation4 + $0x110] sm:$0xff]
    %v298 = vld [vmem:[#allocation4 + $0x118] sm:$0xff]
    %v299 = vld [vmem:[#allocation4 + $0x120] sm:$0xff]
    %v300 = vld [vmem:[#allocation4 + $0x128] sm:$0xff]
    %v301 = vld [vmem:[#allocation4 + $0x130] sm:$0xff]
    %v302 = vld [vmem:[#allocation4 + $0x138] sm:$0xff]
    %v303 = vld [vmem:[#allocation4 + $0x140] sm:$0xff]
    %v304 = vld [vmem:[#allocation4 + $0x148] sm:$0xff]
    %v305 = vld [vmem:[#allocation4 + $0x150] sm:$0xff]
    %v306 = vld [vmem:[#allocation4 + $0x158] sm:$0xff]
    %v307 = vld [vmem:[#allocation4 + $0x160] sm:$0xff]
    %v308 = vld [vmem:[#allocation4 + $0x168] sm:$0xff]
    %v309 = vld [vmem:[#allocation4 + $0x170] sm:$0xff]
    %v310 = vld [vmem:[#allocation4 + $0x178] sm:$0xff]
    %v311 = vld [vmem:[#allocation4 + $0x180] sm:$0xff]
    %v312 = vld [vmem:[#allocation4 + $0x188] sm:$0xff]
    %v313 = vld [vmem:[#allocation4 + $0x190] sm:$0xff]
    %v314 = vld [vmem:[#allocation4 + $0x198] sm:$0xff]
    %v315 = vld [vmem:[#allocation4 + $0x1a0] sm:$0xff]
    %v316 = vld [vmem:[#allocation4 + $0x1a8] sm:$0xff]
    %v317 = vld [vmem:[#allocation4 + $0x1b0] sm:$0xff]
    %v318 = vld [vmem:[#allocation4 + $0x1b8] sm:$0xff]
    %v319 = vld [vmem:[#allocation4 + $0x1c0] sm:$0xff]
    %v320 = vld [vmem:[#allocation4 + $0x1c8] sm:$0xff]
    %v321 = vld [vmem:[#allocation4 + $0x1d0] sm:$0xff]
    %v322 = vld [vmem:[#allocation4 + $0x1d8] sm:$0xff]
    %v323 = vld [vmem:[#allocation4 + $0x1e0] sm:$0xff]
    %v324 = vld [vmem:[#allocation4 + $0x1e8] sm:$0xff]
    %v325 = vld [vmem:[#allocation4 + $0x1f0] sm:$0xff]
    %v326 = vld [vmem:[#allocation4 + $0x1f8] sm:$0xff]
    %v327 = vld [vmem:[%s4] sm:$0x3]
    %v329 = vlaneseq
    %v330 = vshrl.u32 %v329, 7
    %v331 = vsub.s32 0, %v330
    %v332 = vrot.slane %v327, %v331
    %v333 = vlaneseq
    %v334 = vshrl.u32 %v333, 7
    %v335 = vsub.s32 1, %v334
    %v336 = vrot.slane %v327, %v335
    %v403 = vunpack.c.l.b16 %v263
    %v404 = vunpack.c.h.b16 %v263
    %v405 = vunpack.c.l.b16 %v264
    %v406 = vunpack.c.h.b16 %v264
    %v407 = vunpack.c.l.b16 %v265
    %v408 = vunpack.c.h.b16 %v265
    %v409 = vunpack.c.l.b16 %v266
    %v410 = vunpack.c.h.b16 %v266
    %v411 = vunpack.c.l.b16 %v267
    %v412 = vunpack.c.h.b16 %v267
    %v413 = vunpack.c.l.b16 %v268
    %v414 = vunpack.c.h.b16 %v268
    %v415 = vunpack.c.l.b16 %v269
    %v416 = vunpack.c.h.b16 %v269
    %v417 = vunpack.c.l.b16 %v270
    %v418 = vunpack.c.h.b16 %v270
    %v419 = vunpack.c.l.b16 %v271
    %v420 = vunpack.c.h.b16 %v271
    %v421 = vunpack.c.l.b16 %v272
    %v422 = vunpack.c.h.b16 %v272
    %v423 = vunpack.c.l.b16 %v273
    %v424 = vunpack.c.h.b16 %v273
    %v425 = vunpack.c.l.b16 %v274
    %v426 = vunpack.c.h.b16 %v274
    %v427 = vunpack.c.l.b16 %v275
    %v428 = vunpack.c.h.b16 %v275
    %v429 = vunpack.c.l.b16 %v276
    %v430 = vunpack.c.h.b16 %v276
    %v431 = vunpack.c.l.b16 %v277
    %v432 = vunpack.c.h.b16 %v277
    %v433 = vunpack.c.l.b16 %v278
    %v434 = vunpack.c.h.b16 %v278
    %v435 = vunpack.c.l.b16 %v279
    %v436 = vunpack.c.h.b16 %v279
    %v437 = vunpack.c.l.b16 %v280
    %v438 = vunpack.c.h.b16 %v280
    %v439 = vunpack.c.l.b16 %v281
    %v440 = vunpack.c.h.b16 %v281
    %v441 = vunpack.c.l.b16 %v282
    %v442 = vunpack.c.h.b16 %v282
    %v443 = vunpack.c.l.b16 %v283
    %v444 = vunpack.c.h.b16 %v283
    %v445 = vunpack.c.l.b16 %v284
    %v446 = vunpack.c.h.b16 %v284
    %v447 = vunpack.c.l.b16 %v285
    %v448 = vunpack.c.h.b16 %v285
    %v449 = vunpack.c.l.b16 %v286
    %v450 = vunpack.c.h.b16 %v286
    %v451 = vunpack.c.l.b16 %v287
    %v452 = vunpack.c.h.b16 %v287
    %v453 = vunpack.c.l.b16 %v288
    %v454 = vunpack.c.h.b16 %v288
    %v455 = vunpack.c.l.b16 %v289
    %v456 = vunpack.c.h.b16 %v289
    %v457 = vunpack.c.l.b16 %v290
    %v458 = vunpack.c.h.b16 %v290
    %v459 = vunpack.c.l.b16 %v291
    %v460 = vunpack.c.h.b16 %v291
    %v461 = vunpack.c.l.b16 %v292
    %v462 = vunpack.c.h.b16 %v292
    %v463 = vunpack.c.l.b16 %v293
    %v464 = vunpack.c.h.b16 %v293
    %v465 = vunpack.c.l.b16 %v294
    %v466 = vunpack.c.h.b16 %v294
    %v467 = vunpack.c.l.b16 %v295
    %v468 = vunpack.c.h.b16 %v295
    %v469 = vunpack.c.l.b16 %v296
    %v470 = vunpack.c.h.b16 %v296
    %v471 = vunpack.c.l.b16 %v297
    %v472 = vunpack.c.h.b16 %v297
    %v473 = vunpack.c.l.b16 %v298
    %v474 = vunpack.c.h.b16 %v298
    %v475 = vunpack.c.l.b16 %v299
    %v476 = vunpack.c.h.b16 %v299
    %v477 = vunpack.c.l.b16 %v300
    %v478 = vunpack.c.h.b16 %v300
    %v479 = vunpack.c.l.b16 %v301
    %v480 = vunpack.c.h.b16 %v301
    %v481 = vunpack.c.l.b16 %v302
    %v482 = vunpack.c.h.b16 %v302
    %v483 = vunpack.c.l.b16 %v303
    %v484 = vunpack.c.h.b16 %v303
    %v485 = vunpack.c.l.b16 %v304
    %v486 = vunpack.c.h.b16 %v304
    %v487 = vunpack.c.l.b16 %v305
    %v488 = vunpack.c.h.b16 %v305
    %v489 = vunpack.c.l.b16 %v306
    %v490 = vunpack.c.h.b16 %v306
    %v491 = vunpack.c.l.b16 %v307
    %v492 = vunpack.c.h.b16 %v307
    %v493 = vunpack.c.l.b16 %v308
    %v494 = vunpack.c.h.b16 %v308
    %v495 = vunpack.c.l.b16 %v309
    %v496 = vunpack.c.h.b16 %v309
    %v497 = vunpack.c.l.b16 %v310
    %v498 = vunpack.c.h.b16 %v310
    %v499 = vunpack.c.l.b16 %v311
    %v500 = vunpack.c.h.b16 %v311
    %v501 = vunpack.c.l.b16 %v312
    %v502 = vunpack.c.h.b16 %v312
    %v503 = vunpack.c.l.b16 %v313
    %v504 = vunpack.c.h.b16 %v313
    %v505 = vunpack.c.l.b16 %v314
    %v506 = vunpack.c.h.b16 %v314
    %v507 = vunpack.c.l.b16 %v315
    %v508 = vunpack.c.h.b16 %v315
    %v509 = vunpack.c.l.b16 %v316
    %v510 = vunpack.c.h.b16 %v316
    %v511 = vunpack.c.l.b16 %v317
    %v512 = vunpack.c.h.b16 %v317
    %v513 = vunpack.c.l.b16 %v318
    %v514 = vunpack.c.h.b16 %v318
    %v515 = vunpack.c.l.b16 %v319
    %v516 = vunpack.c.h.b16 %v319
    %v517 = vunpack.c.l.b16 %v320
    %v518 = vunpack.c.h.b16 %v320
    %v519 = vunpack.c.l.b16 %v321
    %v520 = vunpack.c.h.b16 %v321
    %v521 = vunpack.c.l.b16 %v322
    %v522 = vunpack.c.h.b16 %v322
    %v523 = vunpack.c.l.b16 %v323
    %v524 = vunpack.c.h.b16 %v323
    %v525 = vunpack.c.l.b16 %v324
    %v526 = vunpack.c.h.b16 %v324
    %v527 = vunpack.c.l.b16 %v325
    %v528 = vunpack.c.h.b16 %v325
    %v529 = vunpack.c.l.b16 %v326
    %v530 = vunpack.c.h.b16 %v326
    %v531 = vpack.c.b16 %v405, %v403
    %v532 = vpack.c.b16 %v406, %v404
    %v533 = vpack.c.b16 %v409, %v407
    %v534 = vpack.c.b16 %v410, %v408
    %v535 = vpack.c.b16 %v413, %v411
    %v536 = vpack.c.b16 %v414, %v412
    %v537 = vpack.c.b16 %v417, %v415
    %v538 = vpack.c.b16 %v418, %v416
    %v539 = vpack.c.b16 %v421, %v419
    %v540 = vpack.c.b16 %v422, %v420
    %v541 = vpack.c.b16 %v425, %v423
    %v542 = vpack.c.b16 %v426, %v424
    %v543 = vpack.c.b16 %v429, %v427
    %v544 = vpack.c.b16 %v430, %v428
    %v545 = vpack.c.b16 %v433, %v431
    %v546 = vpack.c.b16 %v434, %v432
    %v547 = vpack.c.b16 %v437, %v435
    %v548 = vpack.c.b16 %v438, %v436
    %v549 = vpack.c.b16 %v441, %v439
    %v550 = vpack.c.b16 %v442, %v440
    %v551 = vpack.c.b16 %v445, %v443
    %v552 = vpack.c.b16 %v446, %v444
    %v553 = vpack.c.b16 %v449, %v447
    %v554 = vpack.c.b16 %v450, %v448
    %v555 = vpack.c.b16 %v453, %v451
    %v556 = vpack.c.b16 %v454, %v452
    %v557 = vpack.c.b16 %v457, %v455
    %v558 = vpack.c.b16 %v458, %v456
    %v559 = vpack.c.b16 %v461, %v459
    %v560 = vpack.c.b16 %v462, %v460
    %v561 = vpack.c.b16 %v465, %v463
    %v562 = vpack.c.b16 %v466, %v464
    %v563 = vpack.c.b16 %v469, %v467
    %v564 = vpack.c.b16 %v470, %v468
    %v565 = vpack.c.b16 %v473, %v471
    %v566 = vpack.c.b16 %v474, %v472
    %v567 = vpack.c.b16 %v477, %v475
    %v568 = vpack.c.b16 %v478, %v476
    %v569 = vpack.c.b16 %v481, %v479
    %v570 = vpack.c.b16 %v482, %v480
    %v571 = vpack.c.b16 %v485, %v483
    %v572 = vpack.c.b16 %v486, %v484
    %v573 = vpack.c.b16 %v489, %v487
    %v574 = vpack.c.b16 %v490, %v488
    %v575 = vpack.c.b16 %v493, %v491
    %v576 = vpack.c.b16 %v494, %v492
    %v577 = vpack.c.b16 %v497, %v495
    %v578 = vpack.c.b16 %v498, %v496
    %v579 = vpack.c.b16 %v501, %v499
    %v580 = vpack.c.b16 %v502, %v500
    %v581 = vpack.c.b16 %v505, %v503
    %v582 = vpack.c.b16 %v506, %v504
    %v583 = vpack.c.b16 %v509, %v507
    %v584 = vpack.c.b16 %v510, %v508
    %v585 = vpack.c.b16 %v513, %v511
    %v586 = vpack.c.b16 %v514, %v512
    %v587 = vpack.c.b16 %v517, %v515
    %v588 = vpack.c.b16 %v518, %v516
    %v589 = vpack.c.b16 %v521, %v519
    %v590 = vpack.c.b16 %v522, %v520
    %v591 = vpack.c.b16 %v525, %v523
    %v592 = vpack.c.b16 %v526, %v524
    %v593 = vpack.c.b16 %v529, %v527
    %v594 = vpack.c.b16 %v530, %v528
    %659 = vmatprep.subr.bf16.mxu0 %v532
    %660 = vmatpush1.bf16.msra.mxu0 %v531
    %661 = vmatprep.subr.bf16.mxu0 %v534
    %662 = vmatpush1.bf16.msra.mxu0 %v533
    %663 = vmatprep.subr.bf16.mxu0 %v536
    %664 = vmatpush1.bf16.msra.mxu0 %v535
    %665 = vmatprep.subr.bf16.mxu0 %v538
    %666 = vmatpush1.bf16.msra.mxu0 %v537
    %667 = vmatprep.subr.bf16.mxu0 %v540
    %668 = vmatpush1.bf16.msra.mxu0 %v539
    %669 = vmatprep.subr.bf16.mxu0 %v542
    %670 = vmatpush1.bf16.msra.mxu0 %v541
    %671 = vmatprep.subr.bf16.mxu0 %v544
    %672 = vmatpush1.bf16.msra.mxu0 %v543
    %673 = vmatprep.subr.bf16.mxu0 %v546
    %674 = vmatpush1.bf16.msra.mxu0 %v545
    %675 = vmatprep.subr.bf16.mxu0 %v548
    %676 = vmatpush1.bf16.msra.mxu0 %v547
    %677 = vmatprep.subr.bf16.mxu0 %v550
    %678 = vmatpush1.bf16.msra.mxu0 %v549
    %679 = vmatprep.subr.bf16.mxu0 %v552
    %680 = vmatpush1.bf16.msra.mxu0 %v551
    %681 = vmatprep.subr.bf16.mxu0 %v554
    %682 = vmatpush1.bf16.msra.mxu0 %v553
    %683 = vmatprep.subr.bf16.mxu0 %v556
    %684 = vmatpush1.bf16.msra.mxu0 %v555
    %685 = vmatprep.subr.bf16.mxu0 %v558
    %686 = vmatpush1.bf16.msra.mxu0 %v557
    %687 = vmatprep.subr.bf16.mxu0 %v560
    %688 = vmatpush1.bf16.msra.mxu0 %v559
    %689 = vmatprep.subr.bf16.mxu0 %v562
    %690 = vmatpush1.bf16.msra.mxu0 %v561
    %691 = vmatprep.mubr.bf16.mxu0 %v260
    %692 = vmatmul.mubr.bf16.gmra.mrb[0].mxu0 %v259
    %v693 = vpop.f32.mrb[0].mxu0
    %v694 = vadd.f32 %v332, %v693
    %v695 = vpop.f32.mrb[0].mxu0
    %v696 = vadd.f32 %v336, %v695
    %v697 = vpop.f32.mrb[0].mxu0
    %v698 = vadd.f32 %v332, %v697
    %v699 = vpop.f32.mrb[0].mxu0
    %v700 = vadd.f32 %v336, %v699
    %701 = vdwg.mxu0
    %702 = vmatprep.subr.bf16.mxu0 %v564
    %703 = vmatpush1.bf16.msra.mxu0 %v563
    %704 = vmatprep.subr.bf16.mxu0 %v566
    %705 = vmatpush1.bf16.msra.mxu0 %v565
    %706 = vmatprep.subr.bf16.mxu0 %v568
    %707 = vmatpush1.bf16.msra.mxu0 %v567
    %708 = vmatprep.subr.bf16.mxu0 %v570
    %709 = vmatpush1.bf16.msra.mxu0 %v569
    %710 = vmatprep.subr.bf16.mxu0 %v572
    %711 = vmatpush1.bf16.msra.mxu0 %v571
    %712 = vmatprep.subr.bf16.mxu0 %v574
    %713 = vmatpush1.bf16.msra.mxu0 %v573
    %714 = vmatprep.subr.bf16.mxu0 %v576
    %715 = vmatpush1.bf16.msra.mxu0 %v575
    %716 = vmatprep.subr.bf16.mxu0 %v578
    %717 = vmatpush1.bf16.msra.mxu0 %v577
    %718 = vmatprep.subr.bf16.mxu0 %v580
    %719 = vmatpush1.bf16.msra.mxu0 %v579
    %720 = vmatprep.subr.bf16.mxu0 %v582
    %721 = vmatpush1.bf16.msra.mxu0 %v581
    %722 = vmatprep.subr.bf16.mxu0 %v584
    %723 = vmatpush1.bf16.msra.mxu0 %v583
    %724 = vmatprep.subr.bf16.mxu0 %v586
    %725 = vmatpush1.bf16.msra.mxu0 %v585
    %726 = vmatprep.subr.bf16.mxu0 %v588
    %727 = vmatpush1.bf16.msra.mxu0 %v587
    %728 = vmatprep.subr.bf16.mxu0 %v590
    %729 = vmatpush1.bf16.msra.mxu0 %v589
    %730 = vmatprep.subr.bf16.mxu0 %v592
    %731 = vmatpush1.bf16.msra.mxu0 %v591
    %732 = vmatprep.subr.bf16.mxu0 %v594
    %733 = vmatpush1.bf16.msra.mxu0 %v593
    %734 = vmatprep.mubr.bf16.mxu0 %v262
    %735 = vmatmul.mubr.bf16.gmra.mrb[0].mxu0 %v261
    %v736 = vpop.f32.mrb[0].mxu0
    %v737 = vadd.f32 %v694, %v736
    %v738 = vpop.f32.mrb[0].mxu0
    %v739 = vadd.f32 %v696, %v738
    %v740 = vpop.f32.mrb[0].mxu0
    %v741 = vadd.f32 %v698, %v740
    %v742 = vpop.f32.mrb[0].mxu0
    %v743 = vadd.f32 %v700, %v742
    %744 = vdwg.mxu0
    %v745 = vmax.f32 %v737, 0.0
    %v746 = vmax.f32 %v739, 0.0
    %v747 = vmax.f32 %v741, 0.0
    %v748 = vmax.f32 %v743, 0.0
    %v749 = vpack.c.bf16 %v747, %v745
    %v750 = vpack.c.bf16 %v748, %v746
    %v751 = vld [vmem:[#allocation6] sm:$0xf]
    %v752 = vld [vmem:[#allocation6 + $0x4] sm:$0xf]
    %v753 = vld [vmem:[#allocation6 + $0x8] sm:$0xf]
    %v754 = vld [vmem:[#allocation6 + $0xc] sm:$0xf]
    %v755 = vld [vmem:[#allocation6 + $0x10] sm:$0xf]
    %v756 = vld [vmem:[#allocation6 + $0x14] sm:$0xf]
    %v757 = vld [vmem:[#allocation6 + $0x18] sm:$0xf]
    %v758 = vld [vmem:[#allocation6 + $0x1c] sm:$0xf]
    %v759 = vld [vmem:[#allocation6 + $0x20] sm:$0xf]
    %v760 = vld [vmem:[#allocation6 + $0x24] sm:$0xf]
    %v761 = vld [vmem:[#allocation6 + $0x28] sm:$0xf]
    %v762 = vld [vmem:[#allocation6 + $0x2c] sm:$0xf]
    %v763 = vld [vmem:[#allocation6 + $0x30] sm:$0xf]
    %v764 = vld [vmem:[#allocation6 + $0x34] sm:$0xf]
    %v765 = vld [vmem:[#allocation6 + $0x38] sm:$0xf]
    %v766 = vld [vmem:[#allocation6 + $0x3c] sm:$0xf]
    %v767 = vld [vmem:[#allocation6 + $0x40] sm:$0xf]
    %v768 = vld [vmem:[#allocation6 + $0x44] sm:$0xf]
    %v769 = vld [vmem:[#allocation6 + $0x48] sm:$0xf]
    %v770 = vld [vmem:[#allocation6 + $0x4c] sm:$0xf]
    %v771 = vld [vmem:[#allocation6 + $0x50] sm:$0xf]
    %v772 = vld [vmem:[#allocation6 + $0x54] sm:$0xf]
    %v773 = vld [vmem:[#allocation6 + $0x58] sm:$0xf]
    %v774 = vld [vmem:[#allocation6 + $0x5c] sm:$0xf]
    %v775 = vld [vmem:[#allocation6 + $0x60] sm:$0xf]
    %v776 = vld [vmem:[#allocation6 + $0x64] sm:$0xf]
    %v777 = vld [vmem:[#allocation6 + $0x68] sm:$0xf]
    %v778 = vld [vmem:[#allocation6 + $0x6c] sm:$0xf]
    %v779 = vld [vmem:[#allocation6 + $0x70] sm:$0xf]
    %v780 = vld [vmem:[#allocation6 + $0x74] sm:$0xf]
    %v781 = vld [vmem:[#allocation6 + $0x78] sm:$0xf]
    %v782 = vld [vmem:[#allocation6 + $0x7c] sm:$0xf]
    %v783 = vld [vmem:[%s6] sm:$0x1]
    %v785 = vlaneseq
    %v786 = vshrl.u32 %v785, 7
    %v787 = vsub.s32 0, %v786
    %v788 = vrot.slane %v783, %v787
    %v822 = vunpack.c.l.b16 %v751
    %v823 = vunpack.c.l.b16 %v752
    %v824 = vunpack.c.l.b16 %v753
    %v825 = vunpack.c.l.b16 %v754
    %v826 = vunpack.c.l.b16 %v755
    %v827 = vunpack.c.l.b16 %v756
    %v828 = vunpack.c.l.b16 %v757
    %v829 = vunpack.c.l.b16 %v758
    %v830 = vunpack.c.l.b16 %v759
    %v831 = vunpack.c.l.b16 %v760
    %v832 = vunpack.c.l.b16 %v761
    %v833 = vunpack.c.l.b16 %v762
    %v834 = vunpack.c.l.b16 %v763
    %v835 = vunpack.c.l.b16 %v764
    %v836 = vunpack.c.l.b16 %v765
    %v837 = vunpack.c.l.b16 %v766
    %v838 = vunpack.c.l.b16 %v767
    %v839 = vunpack.c.l.b16 %v768
    %v840 = vunpack.c.l.b16 %v769
    %v841 = vunpack.c.l.b16 %v770
    %v842 = vunpack.c.l.b16 %v771
    %v843 = vunpack.c.l.b16 %v772
    %v844 = vunpack.c.l.b16 %v773
    %v845 = vunpack.c.l.b16 %v774
    %v846 = vunpack.c.l.b16 %v775
    %v847 = vunpack.c.l.b16 %v776
    %v848 = vunpack.c.l.b16 %v777
    %v849 = vunpack.c.l.b16 %v778
    %v850 = vunpack.c.l.b16 %v779
    %v851 = vunpack.c.l.b16 %v780
    %v852 = vunpack.c.l.b16 %v781
    %v853 = vunpack.c.l.b16 %v782
    %v854 = vpack.c.b16 %v823, %v822
    %v855 = vpack.c.b16 %v825, %v824
    %v856 = vpack.c.b16 %v827, %v826
    %v857 = vpack.c.b16 %v829, %v828
    %v858 = vpack.c.b16 %v831, %v830
    %v859 = vpack.c.b16 %v833, %v832
    %v860 = vpack.c.b16 %v835, %v834
    %v861 = vpack.c.b16 %v837, %v836
    %v862 = vpack.c.b16 %v839, %v838
    %v863 = vpack.c.b16 %v841, %v840
    %v864 = vpack.c.b16 %v843, %v842
    %v865 = vpack.c.b16 %v845, %v844
    %v866 = vpack.c.b16 %v847, %v846
    %v867 = vpack.c.b16 %v849, %v848
    %v868 = vpack.c.b16 %v851, %v850
    %v869 = vpack.c.b16 %v853, %v852
    %886 = vmatprep.subr.bf16.mxu0 0
    %887 = vmatpush1.bf16.msra.mxu0 %v854
    %888 = vmatprep.subr.bf16.mxu0 0
    %889 = vmatpush1.bf16.msra.mxu0 %v855
    %890 = vmatprep.subr.bf16.mxu0 0
    %891 = vmatpush1.bf16.msra.mxu0 %v856
    %892 = vmatprep.subr.bf16.mxu0 0
    %893 = vmatpush1.bf16.msra.mxu0 %v857
    %894 = vmatprep.subr.bf16.mxu0 0
    %895 = vmatpush1.bf16.msra.mxu0 %v858
    %896 = vmatprep.subr.bf16.mxu0 0
    %897 = vmatpush1.bf16.msra.mxu0 %v859
    %898 = vmatprep.subr.bf16.mxu0 0
    %899 = vmatpush1.bf16.msra.mxu0 %v860
    %900 = vmatprep.subr.bf16.mxu0 0
    %901 = vmatpush1.bf16.msra.mxu0 %v861
    %902 = vmatprep.subr.bf16.mxu0 0
    %903 = vmatpush1.bf16.msra.mxu0 %v862
    %904 = vmatprep.subr.bf16.mxu0 0
    %905 = vmatpush1.bf16.msra.mxu0 %v863
    %906 = vmatprep.subr.bf16.mxu0 0
    %907 = vmatpush1.bf16.msra.mxu0 %v864
    %908 = vmatprep.subr.bf16.mxu0 0
    %909 = vmatpush1.bf16.msra.mxu0 %v865
    %910 = vmatprep.subr.bf16.mxu0 0
    %911 = vmatpush1.bf16.msra.mxu0 %v866
    %912 = vmatprep.subr.bf16.mxu0 0
    %913 = vmatpush1.bf16.msra.mxu0 %v867
    %914 = vmatprep.subr.bf16.mxu0 0
    %915 = vmatpush1.bf16.msra.mxu0 %v868
    %916 = vmatprep.subr.bf16.mxu0 0
    %917 = vmatpush1.bf16.msra.mxu0 %v869
    %918 = vmatprep.mubr.bf16.mxu0 %v750
    %919 = vmatmul.mubr.bf16.gmra.mrb[0].mxu0 %v749
    %v920 = vpop.f32.mrb[0].mxu0
    %v921 = vadd.f32 %v788, %v920
    %v922 = vpop.f32.mrb[0].mxu0
    %v923 = vpop.f32.mrb[0].mxu0
    %v924 = vadd.f32 %v788, %v923
    %v925 = vpop.f32.mrb[0].mxu0
    %926 = vdwg.mxu0
    %v927 = vmax.f32 %v921, 0.0
    %v928 = vmax.f32 %v924, 0.0
    %v929 = vpack.c.bf16 %v928, %v927
    %v930 = vld [vmem:[#allocation7] sm:$0xf]
    %v931 = vld [vmem:[#allocation7 + $0x4] sm:$0xf]
    %v932 = vld [vmem:[#allocation7 + $0x8] sm:$0xf]
    %v933 = vld [vmem:[#allocation7 + $0xc] sm:$0xf]
    %v934 = vld [vmem:[#allocation7 + $0x10] sm:$0xf]
    %v935 = vld [vmem:[#allocation7 + $0x14] sm:$0xf]
    %v936 = vld [vmem:[#allocation7 + $0x18] sm:$0xf]
    %v937 = vld [vmem:[#allocation7 + $0x1c] sm:$0xf]
    %v938 = vld [vmem:[#allocation7 + $0x20] sm:$0xf]
    %v939 = vld [vmem:[#allocation7 + $0x24] sm:$0xf]
    %v940 = vld [vmem:[#allocation7 + $0x28] sm:$0xf]
    %v941 = vld [vmem:[#allocation7 + $0x2c] sm:$0xf]
    %v942 = vld [vmem:[#allocation7 + $0x30] sm:$0xf]
    %v943 = vld [vmem:[#allocation7 + $0x34] sm:$0xf]
    %v944 = vld [vmem:[#allocation7 + $0x38] sm:$0xf]
    %v945 = vld [vmem:[#allocation7 + $0x3c] sm:$0xf]
    %v946 = vld [vmem:[%s8] sm:$0x1]
    %v948 = vlaneseq
    %v949 = vshrl.u32 %v948, 7
    %v950 = vsub.s32 0, %v949
    %v951 = vrot.slane %v946, %v950
    %v969 = vunpack.c.l.b16 %v930
    %v970 = vunpack.c.l.b16 %v931
    %v971 = vunpack.c.l.b16 %v932
    %v972 = vunpack.c.l.b16 %v933
    %v973 = vunpack.c.l.b16 %v934
    %v974 = vunpack.c.l.b16 %v935
    %v975 = vunpack.c.l.b16 %v936
    %v976 = vunpack.c.l.b16 %v937
    %v977 = vunpack.c.l.b16 %v938
    %v978 = vunpack.c.l.b16 %v939
    %v979 = vunpack.c.l.b16 %v940
    %v980 = vunpack.c.l.b16 %v941
    %v981 = vunpack.c.l.b16 %v942
    %v982 = vunpack.c.l.b16 %v943
    %v983 = vunpack.c.l.b16 %v944
    %v984 = vunpack.c.l.b16 %v945
    %v985 = vpack.c.b16 %v970, %v969
    %v986 = vpack.c.b16 %v972, %v971
    %v987 = vpack.c.b16 %v974, %v973
    %v988 = vpack.c.b16 %v976, %v975
    %v989 = vpack.c.b16 %v978, %v977
    %v990 = vpack.c.b16 %v980, %v979
    %v991 = vpack.c.b16 %v982, %v981
    %v992 = vpack.c.b16 %v984, %v983
    %1001 = vmatprep.subr.bf16.mxu0 0
    %1002 = vmatpush1.bf16.msra.mxu0 %v985
    %1003 = vmatprep.subr.bf16.mxu0 0
    %1004 = vmatpush1.bf16.msra.mxu0 %v986
    %1005 = vmatprep.subr.bf16.mxu0 0
    %1006 = vmatpush1.bf16.msra.mxu0 %v987
    %1007 = vmatprep.subr.bf16.mxu0 0
    %1008 = vmatpush1.bf16.msra.mxu0 %v988
    %1009 = vmatprep.subr.bf16.mxu0 0
    %1010 = vmatpush1.bf16.msra.mxu0 %v989
    %1011 = vmatprep.subr.bf16.mxu0 0
    %1012 = vmatpush1.bf16.msra.mxu0 %v990
    %1013 = vmatprep.subr.bf16.mxu0 0
    %1014 = vmatpush1.bf16.msra.mxu0 %v991
    %1015 = vmatprep.subr.bf16.mxu0 0
    %1016 = vmatpush1.bf16.msra.mxu0 %v992
    %1017 = vmatprep.subr.bf16.mxu0 0
    %1018 = vmatpush1.bf16.msra.mxu0 0
    %1019 = vmatprep.subr.bf16.mxu0 0
    %1020 = vmatpush1.bf16.msra.mxu0 0
    %1021 = vmatprep.subr.bf16.mxu0 0
    %1022 = vmatpush1.bf16.msra.mxu0 0
    %1023 = vmatprep.subr.bf16.mxu0 0
    %1024 = vmatpush1.bf16.msra.mxu0 0
    %1025 = vmatprep.subr.bf16.mxu0 0
    %1026 = vmatpush1.bf16.msra.mxu0 0
    %1027 = vmatprep.subr.bf16.mxu0 0
    %1028 = vmatpush1.bf16.msra.mxu0 0
    %1029 = vmatprep.subr.bf16.mxu0 0
    %1030 = vmatpush1.bf16.msra.mxu0 0
    %1031 = vmatprep.subr.bf16.mxu0 0
    %1032 = vmatpush1.bf16.msra.mxu0 0
    %1033 = vmatprep.mubr.bf16.mxu0 0
    %1034 = vmatmul.mubr.bf16.gmra.mrb[0].mxu0 %v929
    %v1035 = vpop.f32.mrb[0].mxu0
    %v1036 = vadd.f32 %v951, %v1035
    %v1037 = vpop.f32.mrb[0].mxu0
    %v1038 = vpop.f32.mrb[0].mxu0
    %v1039 = vadd.f32 %v951, %v1038
    %v1040 = vpop.f32.mrb[0].mxu0
    %1041 = vdwg.mxu0
    %v1042 = vmax.f32 %v1036, 0.0
    %v1043 = vmax.f32 %v1039, 0.0
    %v1044 = vpack.c.bf16 %v1043, %v1042
    %v1046 = vunpack.c.l.b16 %v1044
    %v1047 = vunpack.c.h.b16 %v1044
    %v1048 = vpack.c.b16 %v1046, %v1046
    %v1049 = vpack.c.b16 %v1047, %v1047
    %1052 = vst [vmem:[%s9] sm:$0xf] %v1048
    %1053 = vst [vmem:[%s9 + $0x4] sm:$0xf] %v1049
    // Predicated region
    $region54: #{dn_forward.1} parent=1 // pred_check
      _
    $region55: #{dn_forward.1} parent=1 // pred_check_branch
      %1055 = sbr.rel (0) target = $region57
    $region56: #{dn_forward.1} parent=1 // pred_region
      _
    $region57: #{dn_forward.1} parent=1 // pred_fallthru
      _
    // Predicated region
    $region58: #{dn_forward.1} parent=1 // pred_check
      _
    $region59: #{dn_forward.1} parent=1 // pred_check_branch
      %1057 = sbr.rel (0) target = $region61
    $region60: #{dn_forward.1} parent=1 // pred_region
      _
    $region61: #{dn_forward.1} parent=1 // pred_fallthru
      _
    %1058 = vsyncpa [#allocation3], 1
    %1059 = vsyncpa [#allocation5], 1
    %1060 = vsyncpa [#allocation8], 1

</llo_original>
